<compile_context>
chip_gen: v6e
topology: v6e:2x2x1
jax: 0.10.0
libtpu: 0.0.40
codegen_flags: <defaults>
</compile_context>

<pallas_src>
import jax
import jax.numpy as jnp
from jax.experimental import pallas as pl
from jax.experimental.pallas import tpu as pltpu


def residual_block_kernel(x_ref, w1_ref, b1_ref, w2_ref, b2_ref, o_ref):
    x = x_ref[...]                                        # (tb, D), compute dtype
    # layer1 on the MXU (f32 accumulate), bias + ReLU in f32.
    h = jnp.dot(x, w1_ref[...], preferred_element_type=jnp.float32)
    h = jnp.maximum(h + b1_ref[...], 0.0)
    # layer2: feed the MXU in the weight dtype (bf16 when weights are bf16).
    y = jnp.dot(h.astype(w2_ref.dtype), w2_ref[...], preferred_element_type=jnp.float32)
    y = y + b2_ref[...]
    # residual add + final ReLU in f32, cast once on store.
    o_ref[...] = jnp.maximum(y + x.astype(jnp.float32), 0.0).astype(o_ref.dtype)


def _pick_tb(B, sublane):
    """Largest multiple of `sublane` dividing B that still yields >= ~8 grid steps."""
    target = max(sublane, B // 8)
    best = None
    cand = sublane
    while cand <= B:
        if cand <= target and B % cand == 0:
            best = cand
        cand += sublane
    return best if best is not None else B


def residual_block(x, w1, b1, w2, b2, *, tb=None, compute_dtype=None):
    """x: (B, D); w1, w2: (D, D) in PyTorch (out_features, in_features) layout; b: (D,)."""
    B, D = x.shape
    assert D % 128 == 0, "D must be a multiple of 128 (lane-dense tiles / unmasked stores)"
    out_dtype = x.dtype
    compute_dtype = jnp.dtype(compute_dtype if compute_dtype is not None else x.dtype)

    sublane = 16 if compute_dtype.itemsize == 2 else 8
    if tb is None:
        tb = _pick_tb(B, sublane)
    assert B % tb == 0, "batch must be divisible by the row-tile size"

    # Resident-weight scheme: both (D, D) weights live in VMEM for all grid steps.
    w_bytes = 2 * D * D * compute_dtype.itemsize
    if w_bytes > 48 * 1024 * 1024:
        # TODO(synk): large-D path — grid=(B//tb, D//tn) streaming W2 column tiles with
        # h kept in a VMEM scratch (keeps the fusion, fits v7x's 64 MiB VMEM).
        raise NotImplementedError("D too large for resident (D, D) weights in VMEM")

    x_c = x.astype(compute_dtype)
    w1_t = w1.T.astype(compute_dtype)              # (D_in, D_out): kernel does x @ W
    w2_t = w2.T.astype(compute_dtype)
    b1_2d = b1.reshape(1, D).astype(jnp.float32)
    b2_2d = b2.reshape(1, D).astype(jnp.float32)

    vmem_bytes = (
        w_bytes                                          # W1^T + W2^T (single-buffered)
        + 2 * tb * D * compute_dtype.itemsize            # x tile, double-buffered
        + 2 * tb * D * jnp.dtype(out_dtype).itemsize     # out tile, double-buffered
        + 2 * 2 * D * 4                                  # biases
        + 2 * tb * D * 4                                 # f32 intermediates (h, y)
    )
    vmem_limit = int(min(vmem_bytes + (8 << 20), 64 << 20))

    cost = pl.CostEstimate(
        flops=2 * 2 * B * D * D,
        transcendentals=0,
        bytes_accessed=(
            x_c.size * compute_dtype.itemsize
            + (w1_t.size + w2_t.size) * compute_dtype.itemsize
            + (b1_2d.size + b2_2d.size) * 4
            + B * D * jnp.dtype(out_dtype).itemsize
        ),
    )

    def build(single_buffer_weights):
        w_kwargs = (
            dict(pipeline_mode=pl.Buffered(buffer_count=1))
            if single_buffer_weights
            else {}
        )
        return pl.pallas_call(
            residual_block_kernel,
            out_shape=jax.ShapeDtypeStruct((B, D), out_dtype),
            grid_spec=pltpu.PrefetchScalarGridSpec(
                num_scalar_prefetch=0,
                grid=(B // tb,),
                in_specs=[
                    pl.BlockSpec((tb, D), lambda i: (i, 0)),             # x tile
                    pl.BlockSpec((D, D), lambda i: (0, 0), **w_kwargs),  # W1^T (resident)
                    pl.BlockSpec((1, D), lambda i: (0, 0)),              # b1
                    pl.BlockSpec((D, D), lambda i: (0, 0), **w_kwargs),  # W2^T (resident)
                    pl.BlockSpec((1, D), lambda i: (0, 0)),              # b2
                ],
                out_specs=pl.BlockSpec((tb, D), lambda i: (i, 0)),
            ),
            compiler_params=pltpu.CompilerParams(
                dimension_semantics=("parallel",),
                vmem_limit_bytes=vmem_limit,
            ),
            cost_estimate=cost,
        )

    try:
        return build(True)(x_c, w1_t, b1_2d, w2_t, b2_2d)
    except Exception:
        # Portability fallback: if this jax version rejects pl.Buffered on a top-level
        # pallas_call BlockSpec, retry with default double buffering (correctness first).
        return build(False)(x_c, w1_t, b1_2d, w2_t, b2_2d)


def residual_block_ref(x, w1, b1, w2, b2):
    h = jnp.maximum(x @ w1.T + b1, 0.0)
    y = h @ w2.T + b2
    return jnp.maximum(y + x, 0.0)


if __name__ == "__main__":
    # Lane-dense hidden dim (multiple of 128) and a batch big enough for a
    # multi-step pipelined grid (tb=16 -> 8 grid steps).
    B, D = 128, 128

    key = jax.random.PRNGKey(0)
    kx, kw1, kb1, kw2, kb2 = jax.random.split(key, 5)

    # Deterministic init mimicking nn.Linear default: U(-1/sqrt(dim), 1/sqrt(dim))
    bound = 1.0 / (D ** 0.5)
    x = jax.random.normal(kx, (B, D), dtype=jnp.float32)
    w1 = jax.random.uniform(kw1, (D, D), minval=-bound, maxval=bound, dtype=jnp.float32)
    b1 = jax.random.uniform(kb1, (D,), minval=-bound, maxval=bound, dtype=jnp.float32)
    w2 = jax.random.uniform(kw2, (D, D), minval=-bound, maxval=bound, dtype=jnp.float32)
    b2 = jax.random.uniform(kb2, (D,), minval=-bound, maxval=bound, dtype=jnp.float32)

    ref = residual_block_ref(x, w1, b1, w2, b2)

    # f32 compute path (tight check against the f32 reference).
    out = jax.block_until_ready(residual_block(x, w1, b1, w2, b2))
    assert out.shape == (B, D)
    assert jnp.allclose(out, ref, atol=1e-4, rtol=1e-4), "f32 path mismatch vs reference"

    # bf16 MXU path (recommended on v6e/v7x): operands bf16, accumulate/elementwise f32.
    out_bf16 = jax.block_until_ready(
        residual_block(x, w1, b1, w2, b2, compute_dtype=jnp.bfloat16)
    )
    assert out_bf16.shape == (B, D)
    assert jnp.allclose(out_bf16.astype(jnp.float32), ref, atol=5e-2, rtol=5e-2), \
        "bf16 path mismatch vs reference"

    print("KERNEL_OK")
</pallas_src>

<mosaic_0001>
module attributes {stable_mosaic.version = 11 : i64} {
  func.func @residual_block_kernel(%arg0: i32, %arg1: memref<16x128xf32, #tpu.memory_space<vmem>>, %arg2: memref<128x128xf32, #tpu.memory_space<vmem>>, %arg3: memref<1x128xf32, #tpu.memory_space<vmem>>, %arg4: memref<128x128xf32, #tpu.memory_space<vmem>>, %arg5: memref<1x128xf32, #tpu.memory_space<vmem>>, %arg6: memref<16x128xf32, #tpu.memory_space<vmem>>) attributes {dimension_semantics = [#tpu.dimension_semantics<parallel>], iteration_bounds = array<i64: 8>, scalar_prefetch = 0 : i64, scratch_operands = 0 : i64, tpu.core_type = #tpu.core_type<tc>, window_params = [{transform_indices = @transform_0, window_bounds = array<i64: 16, 128>}, {pipeline_mode = #tpu.pipeline_mode<synchronous>, transform_indices = @transform_1, window_bounds = array<i64: 128, 128>}, {pipeline_mode = #tpu.pipeline_mode<synchronous>, transform_indices = @transform_2, window_bounds = array<i64: 1, 128>}, {pipeline_mode = #tpu.pipeline_mode<synchronous>, transform_indices = @transform_3, window_bounds = array<i64: 128, 128>}, {pipeline_mode = #tpu.pipeline_mode<synchronous>, transform_indices = @transform_4, window_bounds = array<i64: 1, 128>}, {transform_indices = @transform_5, window_bounds = array<i64: 16, 128>}]} {
    %c0 = arith.constant 0 : index
    %c0_0 = arith.constant 0 : index
    %0 = vector.load %arg1[%c0, %c0_0] : memref<16x128xf32, #tpu.memory_space<vmem>>, vector<16x128xf32>
    %c0_1 = arith.constant 0 : index
    %c0_2 = arith.constant 0 : index
    %1 = vector.load %arg2[%c0_1, %c0_2] : memref<128x128xf32, #tpu.memory_space<vmem>>, vector<128x128xf32>
    %cst = arith.constant dense<0.000000e+00> : vector<16x128xf32>
    %2 = tpu.matmul %0, %1, %cst {dimension_numbers = #tpu.dot_dimension_numbers<[1], [0], [0], [1], [0, 0, 1, 1], [], []>} : vector<16x128xf32>, vector<128x128xf32>, vector<16x128xf32> -> vector<16x128xf32>
    %c0_3 = arith.constant 0 : index
    %c0_4 = arith.constant 0 : index
    %3 = vector.load %arg3[%c0_3, %c0_4] : memref<1x128xf32, #tpu.memory_space<vmem>>, vector<1x128xf32>
    %4 = vector.broadcast %3 : vector<1x128xf32> to vector<16x128xf32>
    %5 = arith.addf %2, %4 : vector<16x128xf32>
    %cst_5 = arith.constant 0.000000e+00 : f32
    %6 = vector.broadcast %cst_5 : f32 to vector<16x128xf32>
    %7 = arith.maximumf %5, %6 : vector<16x128xf32>
    %c0_6 = arith.constant 0 : index
    %c0_7 = arith.constant 0 : index
    %8 = vector.load %arg4[%c0_6, %c0_7] : memref<128x128xf32, #tpu.memory_space<vmem>>, vector<128x128xf32>
    %cst_8 = arith.constant dense<0.000000e+00> : vector<16x128xf32>
    %9 = tpu.matmul %7, %8, %cst_8 {dimension_numbers = #tpu.dot_dimension_numbers<[1], [0], [0], [1], [0, 0, 1, 1], [], []>} : vector<16x128xf32>, vector<128x128xf32>, vector<16x128xf32> -> vector<16x128xf32>
    %c0_9 = arith.constant 0 : index
    %c0_10 = arith.constant 0 : index
    %10 = vector.load %arg5[%c0_9, %c0_10] : memref<1x128xf32, #tpu.memory_space<vmem>>, vector<1x128xf32>
    %11 = vector.broadcast %10 : vector<1x128xf32> to vector<16x128xf32>
    %12 = arith.addf %9, %11 : vector<16x128xf32>
    %13 = arith.addf %12, %0 : vector<16x128xf32>
    %cst_11 = arith.constant 0.000000e+00 : f32
    %14 = vector.broadcast %cst_11 : f32 to vector<16x128xf32>
    %15 = arith.maximumf %13, %14 : vector<16x128xf32>
    %c0_12 = arith.constant 0 : index
    %c0_13 = arith.constant 0 : index
    %16 = vector.load %arg6[%c0_12, %c0_13] : memref<16x128xf32, #tpu.memory_space<vmem>>, vector<16x128xf32>
    tpu.vector_store %arg6[%c0_12, %c0_13], %15 {strides = array<i32>} : memref<16x128xf32, #tpu.memory_space<vmem>>, vector<16x128xf32>,
    return
  }
  func.func @transform_0(%arg0: i32) -> (i32, i32) {
    %c0_i32 = arith.constant 0 : i32
    %c0_i32_0 = arith.constant 0 : i32
    return %arg0, %c0_i32 : i32, i32
  }
  func.func @transform_1(%arg0: i32) -> (i32, i32) {
    %c0_i32 = arith.constant 0 : i32
    %c0_i32_0 = arith.constant 0 : i32
    %c0_i32_1 = arith.constant 0 : i32
    return %c0_i32, %c0_i32_0 : i32, i32
  }
  func.func @transform_2(%arg0: i32) -> (i32, i32) {
    %c0_i32 = arith.constant 0 : i32
    %c0_i32_0 = arith.constant 0 : i32
    %c0_i32_1 = arith.constant 0 : i32
    return %c0_i32, %c0_i32_0 : i32, i32
  }
  func.func @transform_3(%arg0: i32) -> (i32, i32) {
    %c0_i32 = arith.constant 0 : i32
    %c0_i32_0 = arith.constant 0 : i32
    %c0_i32_1 = arith.constant 0 : i32
    return %c0_i32, %c0_i32_0 : i32, i32
  }
  func.func @transform_4(%arg0: i32) -> (i32, i32) {
    %c0_i32 = arith.constant 0 : i32
    %c0_i32_0 = arith.constant 0 : i32
    %c0_i32_1 = arith.constant 0 : i32
    return %c0_i32, %c0_i32_0 : i32, i32
  }
  func.func @transform_5(%arg0: i32) -> (i32, i32) {
    %c0_i32 = arith.constant 0 : i32
    %c0_i32_0 = arith.constant 0 : i32
    return %arg0, %c0_i32 : i32, i32
  }
}

module attributes {stable_mosaic.version = 11 : i64} {
  func.func @residual_block_kernel(%arg0: i32, %arg1: memref<16x128xf32, #tpu.memory_space<vmem>>, %arg2: memref<128x128xf32, #tpu.memory_space<vmem>>, %arg3: memref<1x128xf32, #tpu.memory_space<vmem>>, %arg4: memref<128x128xf32, #tpu.memory_space<vmem>>, %arg5: memref<1x128xf32, #tpu.memory_space<vmem>>, %arg6: memref<16x128xf32, #tpu.memory_space<vmem>>) attributes {dimension_semantics = [#tpu.dimension_semantics<parallel>], iteration_bounds = array<i64: 8>, scalar_prefetch = 0 : i64, scratch_operands = 0 : i64, tpu.core_type = #tpu.core_type<tc>, window_params = [{transform_indices = @transform_0, window_bounds = array<i64: 16, 128>}, {pipeline_mode = #tpu.pipeline_mode<synchronous>, transform_indices = @transform_1, window_bounds = array<i64: 128, 128>}, {pipeline_mode = #tpu.pipeline_mode<synchronous>, transform_indices = @transform_2, window_bounds = array<i64: 1, 128>}, {pipeline_mode = #tpu.pipeline_mode<synchronous>, transform_indices = @transform_3, window_bounds = array<i64: 128, 128>}, {pipeline_mode = #tpu.pipeline_mode<synchronous>, transform_indices = @transform_4, window_bounds = array<i64: 1, 128>}, {transform_indices = @transform_5, window_bounds = array<i64: 16, 128>}]} {
    %c0 = arith.constant 0 : index
    %c0_0 = arith.constant 0 : index
    %0 = vector.load %arg1[%c0, %c0_0] : memref<16x128xf32, #tpu.memory_space<vmem>>, vector<16x128xf32>
    %c0_1 = arith.constant 0 : index
    %c0_2 = arith.constant 0 : index
    %1 = vector.load %arg2[%c0_1, %c0_2] : memref<128x128xf32, #tpu.memory_space<vmem>>, vector<128x128xf32>
    %cst = arith.constant dense<0.000000e+00> : vector<16x128xf32>
    %2 = tpu.matmul %0, %1, %cst {dimension_numbers = #tpu.dot_dimension_numbers<[1], [0], [0], [1], [0, 0, 1, 1], [], []>} : vector<16x128xf32>, vector<128x128xf32>, vector<16x128xf32> -> vector<16x128xf32>
    %c0_3 = arith.constant 0 : index
    %c0_4 = arith.constant 0 : index
    %3 = vector.load %arg3[%c0_3, %c0_4] : memref<1x128xf32, #tpu.memory_space<vmem>>, vector<1x128xf32>
    %4 = vector.broadcast %3 : vector<1x128xf32> to vector<16x128xf32>
    %5 = arith.addf %2, %4 : vector<16x128xf32>
    %cst_5 = arith.constant 0.000000e+00 : f32
    %6 = vector.broadcast %cst_5 : f32 to vector<16x128xf32>
    %7 = arith.maximumf %5, %6 : vector<16x128xf32>
    %c0_6 = arith.constant 0 : index
    %c0_7 = arith.constant 0 : index
    %8 = vector.load %arg4[%c0_6, %c0_7] : memref<128x128xf32, #tpu.memory_space<vmem>>, vector<128x128xf32>
    %cst_8 = arith.constant dense<0.000000e+00> : vector<16x128xf32>
    %9 = tpu.matmul %7, %8, %cst_8 {dimension_numbers = #tpu.dot_dimension_numbers<[1], [0], [0], [1], [0, 0, 1, 1], [], []>} : vector<16x128xf32>, vector<128x128xf32>, vector<16x128xf32> -> vector<16x128xf32>
    %c0_9 = arith.constant 0 : index
    %c0_10 = arith.constant 0 : index
    %10 = vector.load %arg5[%c0_9, %c0_10] : memref<1x128xf32, #tpu.memory_space<vmem>>, vector<1x128xf32>
    %11 = vector.broadcast %10 : vector<1x128xf32> to vector<16x128xf32>
    %12 = arith.addf %9, %11 : vector<16x128xf32>
    %13 = arith.addf %12, %0 : vector<16x128xf32>
    %cst_11 = arith.constant 0.000000e+00 : f32
    %14 = vector.broadcast %cst_11 : f32 to vector<16x128xf32>
    %15 = arith.maximumf %13, %14 : vector<16x128xf32>
    %c0_12 = arith.constant 0 : index
    %c0_13 = arith.constant 0 : index
    %16 = vector.load %arg6[%c0_12, %c0_13] : memref<16x128xf32, #tpu.memory_space<vmem>>, vector<16x128xf32>
    tpu.vector_store %arg6[%c0_12, %c0_13], %15 {strides = array<i32>} : memref<16x128xf32, #tpu.memory_space<vmem>>, vector<16x128xf32>,
    return
  }
  func.func @transform_0(%arg0: i32) -> (i32, i32) {
    %c0_i32 = arith.constant 0 : i32
    %c0_i32_0 = arith.constant 0 : i32
    return %arg0, %c0_i32 : i32, i32
  }
  func.func @transform_1(%arg0: i32) -> (i32, i32) {
    %c0_i32 = arith.constant 0 : i32
    %c0_i32_0 = arith.constant 0 : i32
    %c0_i32_1 = arith.constant 0 : i32
    return %c0_i32, %c0_i32_0 : i32, i32
  }
  func.func @transform_2(%arg0: i32) -> (i32, i32) {
    %c0_i32 = arith.constant 0 : i32
    %c0_i32_0 = arith.constant 0 : i32
    %c0_i32_1 = arith.constant 0 : i32
    return %c0_i32, %c0_i32_0 : i32, i32
  }
  func.func @transform_3(%arg0: i32) -> (i32, i32) {
    %c0_i32 = arith.constant 0 : i32
    %c0_i32_0 = arith.constant 0 : i32
    %c0_i32_1 = arith.constant 0 : i32
    return %c0_i32, %c0_i32_0 : i32, i32
  }
  func.func @transform_4(%arg0: i32) -> (i32, i32) {
    %c0_i32 = arith.constant 0 : i32
    %c0_i32_0 = arith.constant 0 : i32
    %c0_i32_1 = arith.constant 0 : i32
    return %c0_i32, %c0_i32_0 : i32, i32
  }
  func.func @transform_5(%arg0: i32) -> (i32, i32) {
    %c0_i32 = arith.constant 0 : i32
    %c0_i32_0 = arith.constant 0 : i32
    return %arg0, %c0_i32 : i32, i32
  }
}

</mosaic_0001>

<llo_original>
// kernel: tpu_custom_call.1
$region0: #{tpu_custom_call.1}
  #allocation0 [shape = 'u32[]', space=smem, size = 0x4, offset = 0x4, fixed_abs, tag = 'smem constant byte address 0x4 - core index']
  #allocation1 [shape = 'u32[144,128]{1,0:T(1,128)}', space=vmem, size = 0x12000, scoped, tag = 'internal scratch']
  %s0 = inlined_call_operand.hbm [shape: f32[128,128], index: 0, kind: input, shape index: {}]
  %s1 = inlined_call_operand.hbm [shape: f32[128,128], index: 1, kind: input, shape index: {}]
  %s2 = inlined_call_operand.vmem [shape: f32[1,128], index: 2, kind: input, shape index: {}]
  %s3 = inlined_call_operand.hbm [shape: f32[128,128], index: 3, kind: input, shape index: {}]
  %s4 = inlined_call_operand.vmem [shape: f32[1,128], index: 4, kind: input, shape index: {}]
  %s5 = inlined_call_operand.hbm [shape: f32[128,128], index: 5, kind: output, shape index: {}]
  %s6 = sld [smem:[#allocation0]]
  $region65: #{tpu_custom_call.1} parent=0
    _
  %s8 = ssub.s32 1, %s6
  %s9 = scalar_select 0, %s8, %s6
  $region1: #{tpu_custom_call.1} parent=0
    #allocation2 [shape = 'u8[16384]{0}', space=vmem, size = 0x4000, scoped, tag = 'input window, operand 0']
    #allocation3 [shape = 's32[2]{0}', space=sflag, size = 0x8, scoped, tag = 'scoped memory for tpu_custom_call.1']
    #allocation4 [shape = 's32[2]{0}', space=sflag, size = 0x8, scoped, tag = 'scoped memory for tpu_custom_call.1']
    #allocation5 [shape = 'u8[65536]{0}', space=vmem, size = 0x10000, scoped, tag = 'input window, operand 1, single buffered']
    #allocation6 [shape = 's32[1]{0}', space=sflag, size = 0x4, scoped, tag = 'scoped memory for tpu_custom_call.1']
    #allocation7 [shape = 'u8[65536]{0}', space=vmem, size = 0x10000, scoped, tag = 'input window, operand 3, single buffered']
    #allocation8 [shape = 'u8[16384]{0}', space=vmem, size = 0x4000, scoped, tag = 'output window, operand 0']
    %10 = vsyncpa [#allocation3], 0
    %s11 = scalar_lea.sflag [#allocation3], 1
    %12 = vsyncpa %s11, 0
    %13 = vsyncpa [#allocation6], 0
    %14 = vsyncpa [#allocation4], 0
    %s15 = scalar_lea.sflag [#allocation4], 1
    %16 = vsyncpa %s15, 0
    loop: start=0, step=1, limit=10
    $region2: #{tpu_custom_call.1} parent=1 // loop_pre_header
      _
    $region3: #{tpu_custom_call.1} parent=1 // loop_header
      %s18 = sphi 0, %s22
      %p19 = scmp.ge.s32.totalorder %s18, 10
      %s28 = sphi 0, %s30
      %s31 = sphi 0, %s28
      %s32 = sphi 0, %s31
      %s48 = sphi 0, %s32
      %s52 = sphi 0, %s52
      %s54 = sphi 0, %s52
      %s55 = sphi 0, %s54
      %s69 = sphi 0, %s55
      %s73 = sphi 0, %s73
      %s75 = sphi 0, %s73
      %s76 = sphi 0, %s75
      %s90 = sphi 0, %s76
      %s94 = sphi 0, %s94
      %s96 = sphi 0, %s94
      %s97 = sphi 0, %s96
      %s111 = sphi 0, %s97
      %s115 = sphi 0, %s115
      %s117 = sphi 0, %s115
      %s118 = sphi 0, %s117
      %s132 = sphi 0, %s118
      %s138 = sphi 0, %s140
      %s141 = sphi 0, %s138
      %s142 = sphi 0, %s141
      %s158 = sphi 0, %s142
    $region4: #{tpu_custom_call.1} parent=1 // loop_header_branch
      %21 = sbr.rel (%p19) target = $region8
    $region5: #{tpu_custom_call.1} parent=1 // loop_body
      %s23 = ssub.s32 %s18, 1
      %s24 = ssub.s32 %s18, 2
      %s25 = sadd.s32 %s18, 1
      %s26 = ssub.s32 %s18, %s25
      %p27 = scmp.eq.s32.totalorder %s26, 0
      %s29 = sadd.s32 %s28, 1
      %s30 = scalar_select %p27, %s28, %s29
      %p33 = pneg %p27
      %p34 = scmp.eq.s32.totalorder %s18, 7
      %p35 = por %p33, %p34
      %p36 = scmp.ne.s32.totalorder %s28, %s31
      %p37 = scmp.eq.s32.totalorder %s18, 0
      %p38 = por %p36, %p37
      %p39 = scmp.ne.s32.totalorder %s28, %s31
      %p40 = scmp.eq.s32.totalorder %s23, 7
      %p41 = por %p39, %p40
      %p42 = scmp.ne.s32.totalorder %s31, %s32
      %p43 = scmp.eq.s32.totalorder %s23, 0
      %p44 = por %p42, %p43
      %p45 = scmp.ne.s32.totalorder %s31, %s32
      %p46 = scmp.eq.s32.totalorder %s24, 7
      %p47 = por %p45, %p46
      %p49 = scmp.ne.s32.totalorder %s32, %s48
      %p50 = scmp.eq.s32.totalorder %s24, 0
      %p51 = por %p49, %p50
      %s53 = sadd.s32 %s52, 1
      %p56 = scmp.eq.s32.totalorder %s18, 7
      %p57 = scmp.ne.s32.totalorder %s52, %s54
      %p58 = scmp.eq.s32.totalorder %s18, 0
      %p59 = por %p57, %p58
      %p60 = scmp.ne.s32.totalorder %s52, %s54
      %p61 = scmp.eq.s32.totalorder %s23, 7
      %p62 = por %p60, %p61
      %p63 = scmp.ne.s32.totalorder %s54, %s55
      %p64 = scmp.eq.s32.totalorder %s23, 0
      %p65 = por %p63, %p64
      %p66 = scmp.ne.s32.totalorder %s54, %s55
      %p67 = scmp.eq.s32.totalorder %s24, 7
      %p68 = por %p66, %p67
      %p70 = scmp.ne.s32.totalorder %s55, %s69
      %p71 = scmp.eq.s32.totalorder %s24, 0
      %p72 = por %p70, %p71
      %s74 = sadd.s32 %s73, 1
      %p77 = scmp.eq.s32.totalorder %s18, 7
      %p78 = scmp.ne.s32.totalorder %s73, %s75
      %p79 = scmp.eq.s32.totalorder %s18, 0
      %p80 = por %p78, %p79
      %p81 = scmp.ne.s32.totalorder %s73, %s75
      %p82 = scmp.eq.s32.totalorder %s23, 7
      %p83 = por %p81, %p82
      %p84 = scmp.ne.s32.totalorder %s75, %s76
      %p85 = scmp.eq.s32.totalorder %s23, 0
      %p86 = por %p84, %p85
      %p87 = scmp.ne.s32.totalorder %s75, %s76
      %p88 = scmp.eq.s32.totalorder %s24, 7
      %p89 = por %p87, %p88
      %p91 = scmp.ne.s32.totalorder %s76, %s90
      %p92 = scmp.eq.s32.totalorder %s24, 0
      %p93 = por %p91, %p92
      %s95 = sadd.s32 %s94, 1
      %p98 = scmp.eq.s32.totalorder %s18, 7
      %p99 = scmp.ne.s32.totalorder %s94, %s96
      %p100 = scmp.eq.s32.totalorder %s18, 0
      %p101 = por %p99, %p100
      %p102 = scmp.ne.s32.totalorder %s94, %s96
      %p103 = scmp.eq.s32.totalorder %s23, 7
      %p104 = por %p102, %p103
      %p105 = scmp.ne.s32.totalorder %s96, %s97
      %p106 = scmp.eq.s32.totalorder %s23, 0
      %p107 = por %p105, %p106
      %p108 = scmp.ne.s32.totalorder %s96, %s97
      %p109 = scmp.eq.s32.totalorder %s24, 7
      %p110 = por %p108, %p109
      %p112 = scmp.ne.s32.totalorder %s97, %s111
      %p113 = scmp.eq.s32.totalorder %s24, 0
      %p114 = por %p112, %p113
      %s116 = sadd.s32 %s115, 1
      %p119 = scmp.eq.s32.totalorder %s18, 7
      %p120 = scmp.ne.s32.totalorder %s115, %s117
      %p121 = scmp.eq.s32.totalorder %s18, 0
      %p122 = por %p120, %p121
      %p123 = scmp.ne.s32.totalorder %s115, %s117
      %p124 = scmp.eq.s32.totalorder %s23, 7
      %p125 = por %p123, %p124
      %p126 = scmp.ne.s32.totalorder %s117, %s118
      %p127 = scmp.eq.s32.totalorder %s23, 0
      %p128 = por %p126, %p127
      %p129 = scmp.ne.s32.totalorder %s117, %s118
      %p130 = scmp.eq.s32.totalorder %s24, 7
      %p131 = por %p129, %p130
      %p133 = scmp.ne.s32.totalorder %s118, %s132
      %p134 = scmp.eq.s32.totalorder %s24, 0
      %p135 = por %p133, %p134
      %s136 = ssub.s32 %s18, %s25
      %p137 = scmp.eq.s32.totalorder %s136, 0
      %s139 = sadd.s32 %s138, 1
      %s140 = scalar_select %p137, %s138, %s139
      %p143 = pneg %p137
      %p144 = scmp.eq.s32.totalorder %s18, 7
      %p145 = por %p143, %p144
      %p146 = scmp.ne.s32.totalorder %s138, %s141
      %p147 = scmp.eq.s32.totalorder %s18, 0
      %p148 = por %p146, %p147
      %p149 = scmp.ne.s32.totalorder %s138, %s141
      %p150 = scmp.eq.s32.totalorder %s23, 7
      %p151 = por %p149, %p150
      %p152 = scmp.ne.s32.totalorder %s141, %s142
      %p153 = scmp.eq.s32.totalorder %s23, 0
      %p154 = por %p152, %p153
      %p155 = scmp.ne.s32.totalorder %s141, %s142
      %p156 = scmp.eq.s32.totalorder %s24, 7
      %p157 = por %p155, %p156
      %p159 = scmp.ne.s32.totalorder %s142, %s158
      %p160 = scmp.eq.s32.totalorder %s24, 0
      %p161 = por %p159, %p160
      %p162 = scmp.le.s32.totalorder 1, %s18
      %p163 = scmp.lt.s32.totalorder %s18, 9
      %p164 = pnand %p162, %p163
      %p165 = pneg %p164
      // Predicated region
      $region9: #{tpu_custom_call.1} parent=5 // pred_check
        _
      $region10: #{tpu_custom_call.1} parent=5 // pred_check_branch
        %167 = sbr.rel (%p164) target = $region12
      $region11: #{tpu_custom_call.1} parent=5 // pred_region
        %s168 = ssub.s32 %s18, 1
        // Predicated region
        $region13: #{tpu_custom_call.1} parent=11 // pred_check
          %p169 = pneg %p65
        $region14: #{tpu_custom_call.1} parent=11 // pred_check_branch
          %171 = sbr.rel (%p169) target = $region16
        $region15: #{tpu_custom_call.1} parent=11 // pred_region
          %s173 = ssub.s32 2048, 2048
          %174 = vsyncadd [#allocation6], %s173
          %s175 = sshll.u32 [#allocation5], 4
          %s176 = int_to_ptr.vmem [resolvable:$true] %s175
          %181 = dma.hbm_to_vmem [thread:$0]  %s1, 2048, %s176, [#allocation6], 128, 128, 8
        $region16: #{tpu_custom_call.1} parent=11 // pred_fallthru
          _
        // Predicated region
        $region17: #{tpu_custom_call.1} parent=11 // pred_check
          %p182 = pneg %p86
        $region18: #{tpu_custom_call.1} parent=11 // pred_check_branch
          %184 = sbr.rel (%p182) target = $region20
        $region19: #{tpu_custom_call.1} parent=11 // pred_region
          _
        $region20: #{tpu_custom_call.1} parent=11 // pred_fallthru
          _
        // Predicated region
        $region21: #{tpu_custom_call.1} parent=11 // pred_check
          %p185 = pneg %p107
        $region22: #{tpu_custom_call.1} parent=11 // pred_check_branch
          %187 = sbr.rel (%p185) target = $region24
        $region23: #{tpu_custom_call.1} parent=11 // pred_region
          %s189 = ssub.s32 2048, 2048
          %190 = vsyncadd [#allocation6], %s189
          %s191 = sshll.u32 [#allocation7], 4
          %s192 = int_to_ptr.vmem [resolvable:$true] %s191
          %197 = dma.hbm_to_vmem [thread:$0]  %s3, 2048, %s192, [#allocation6], 128, 128, 8
        $region24: #{tpu_custom_call.1} parent=11 // pred_fallthru
          _
        // Predicated region
        $region25: #{tpu_custom_call.1} parent=11 // pred_check
          %p198 = pneg %p128
        $region26: #{tpu_custom_call.1} parent=11 // pred_check_branch
          %200 = sbr.rel (%p198) target = $region28
        $region27: #{tpu_custom_call.1} parent=11 // pred_region
          _
        $region28: #{tpu_custom_call.1} parent=11 // pred_fallthru
          _
      $region12: #{tpu_custom_call.1} parent=5 // pred_fallthru
        _
      %p201 = scmp.lt.s32.totalorder %s18, 8
      // Predicated region
      $region29: #{tpu_custom_call.1} parent=5 // pred_check
        %p202 = pneg %p201
      $region30: #{tpu_custom_call.1} parent=5 // pred_check_branch
        %204 = sbr.rel (%p202) target = $region32
      $region31: #{tpu_custom_call.1} parent=5 // pred_region
        // Predicated region
        $region33: #{tpu_custom_call.1} parent=31 // pred_check
          %p205 = pneg %p38
        $region34: #{tpu_custom_call.1} parent=31 // pred_check_branch
          %207 = sbr.rel (%p205) target = $region36
        $region35: #{tpu_custom_call.1} parent=31 // pred_region
          %s208 = sand.u32 %s28, 1
          %s209 = scalar_lea.sflag [#allocation3], %s208
          %s210 = sand.u32 %s28, 1
          %s211 = smul.addr %s210, 16
          %s212 = scalar_lea.vmem [#allocation2], %s211
          %s213 = smul.u32 2, %s18
          %s215 = ssub.s32 256, 256
          %216 = vsyncadd %s209, %s215
          %s217 = smul.addr %s213, 128
          %s218 = scalar_lea.hbm %s0, %s217
          %s219 = sshll.u32 %s212, 4
          %s220 = int_to_ptr.vmem [resolvable:$true] %s219
          %225 = dma.hbm_to_vmem [thread:$0]  %s218, 256, %s220, %s209, 128, 128, 8
        $region36: #{tpu_custom_call.1} parent=31 // pred_fallthru
          _
      $region32: #{tpu_custom_call.1} parent=5 // pred_fallthru
        _
      %p226 = scmp.le.s32.totalorder 1, %s18
      %p227 = scmp.lt.s32.totalorder %s18, 9
      %p228 = pnand %p226, %p227
      %p229 = pneg %p228
      // Predicated region
      $region37: #{tpu_custom_call.1} parent=5 // pred_check
        _
      $region38: #{tpu_custom_call.1} parent=5 // pred_check_branch
        %231 = sbr.rel (%p228) target = $region40
      $region39: #{tpu_custom_call.1} parent=5 // pred_region
        %s232 = ssub.s32 %s18, 1
        %s233 = sand.u32 %s31, 1
        %s234 = scalar_lea.sflag [#allocation3], %s233
        %s235 = sand.u32 %s31, 1
        %s236 = smul.addr %s235, 16
        %s237 = scalar_lea.vmem [#allocation2], %s236
        // Predicated region
        $region41: #{tpu_custom_call.1} parent=39 // pred_check
          %p238 = pneg %p44
        $region42: #{tpu_custom_call.1} parent=39 // pred_check_branch
          %240 = sbr.rel (%p238) target = $region44
        $region43: #{tpu_custom_call.1} parent=39 // pred_region
          %241 = dma.done %s234, 256
        $region44: #{tpu_custom_call.1} parent=39 // pred_fallthru
          _
        // Predicated region
        $region45: #{tpu_custom_call.1} parent=39 // pred_check
          %p242 = pneg %p65
        $region46: #{tpu_custom_call.1} parent=39 // pred_check_branch
          %244 = sbr.rel (%p242) target = $region48
        $region47: #{tpu_custom_call.1} parent=39 // pred_region
          %245 = dma.done [#allocation6], 2048
        $region48: #{tpu_custom_call.1} parent=39 // pred_fallthru
          _
        // Predicated region
        $region49: #{tpu_custom_call.1} parent=39 // pred_check
          %p246 = pneg %p107
        $region50: #{tpu_custom_call.1} parent=39 // pred_check_branch
          %248 = sbr.rel (%p246) target = $region52
        $region51: #{tpu_custom_call.1} parent=39 // pred_region
          %249 = dma.done [#allocation6], 2048
        $region52: #{tpu_custom_call.1} parent=39 // pred_fallthru
          _
        %s250 = sand.u32 %s31, 1
        %s251 = scalar_lea.sflag [#allocation3], %s250
        %s252 = sand.u32 %s31, 1
        %s253 = smul.addr %s252, 16
        %s254 = scalar_lea.vmem [#allocation2], %s253
        %p255 = pneg %p44
        %p256 = pneg %p41
        %p257 = pneg %p65
        %p258 = pneg %p62
        %p259 = pneg %p86
        %p260 = pneg %p83
        %p261 = pneg %p107
        %p262 = pneg %p104
        %p263 = pneg %p128
        %p264 = pneg %p125
        %p265 = pneg %p154
        %p266 = pneg %p151
        %s267 = sand.u32 %s141, 1
        %s268 = scalar_lea.sflag [#allocation4], %s267
        %s269 = sand.u32 %s141, 1
        %s270 = smul.addr %s269, 16
        %s271 = scalar_lea.vmem [#allocation8], %s270
        %s272 = smul.u32 2, %s23
        %s273 = smul.u32 2, %s23
        %v274 = vld [vmem:[%s237] sm:$0xff]
        %v275 = vld [vmem:[%s237 + $0x8] sm:$0xff]
        %v276 = vld [vmem:[#allocation5] sm:$0xff]
        %v277 = vld [vmem:[#allocation5 + $0x8] sm:$0xff]
        %v278 = vld [vmem:[#allocation5 + $0x10] sm:$0xff]
        %v279 = vld [vmem:[#allocation5 + $0x18] sm:$0xff]
        %v280 = vld [vmem:[#allocation5 + $0x20] sm:$0xff]
        %v281 = vld [vmem:[#allocation5 + $0x28] sm:$0xff]
        %v282 = vld [vmem:[#allocation5 + $0x30] sm:$0xff]
        %v283 = vld [vmem:[#allocation5 + $0x38] sm:$0xff]
        %v284 = vld [vmem:[#allocation5 + $0x40] sm:$0xff]
        %v285 = vld [vmem:[#allocation5 + $0x48] sm:$0xff]
        %v286 = vld [vmem:[#allocation5 + $0x50] sm:$0xff]
        %v287 = vld [vmem:[#allocation5 + $0x58] sm:$0xff]
        %v288 = vld [vmem:[#allocation5 + $0x60] sm:$0xff]
        %v289 = vld [vmem:[#allocation5 + $0x68] sm:$0xff]
        %v290 = vld [vmem:[#allocation5 + $0x70] sm:$0xff]
        %v291 = vld [vmem:[#allocation5 + $0x78] sm:$0xff]
        %v292 = vld [vmem:[%s2] sm:$0x1]
        %v294 = vlaneseq
        %v295 = vshrl.u32 %v294, 7
        %v296 = vsub.s32 0, %v295
        %v297 = vrot.slane %v292, %v296
        %299 = vmatprep.subr.mxu0 0.0
        %300 = vmatpush1.msra.mxu0 %v291
        %301 = vmatprep.subr.mxu0 0.0
        %302 = vmatpush1.msra.mxu0 %v290
        %303 = vmatprep.subr.mxu0 0.0
        %304 = vmatpush1.msra.mxu0 %v289
        %305 = vmatprep.subr.mxu0 0.0
        %306 = vmatpush1.msra.mxu0 %v288
        %307 = vmatprep.subr.mxu0 0.0
        %308 = vmatpush1.msra.mxu0 %v287
        %309 = vmatprep.subr.mxu0 0.0
        %310 = vmatpush1.msra.mxu0 %v286
        %311 = vmatprep.subr.mxu0 0.0
        %312 = vmatpush1.msra.mxu0 %v285
        %313 = vmatprep.subr.mxu0 0.0
        %314 = vmatpush1.msra.mxu0 %v284
        %315 = vmatprep.subr.mxu0 0.0
        %316 = vmatpush1.msra.mxu0 %v283
        %317 = vmatprep.subr.mxu0 0.0
        %318 = vmatpush1.msra.mxu0 %v282
        %319 = vmatprep.subr.mxu0 0.0
        %320 = vmatpush1.msra.mxu0 %v281
        %321 = vmatprep.subr.mxu0 0.0
        %322 = vmatpush1.msra.mxu0 %v280
        %323 = vmatprep.subr.mxu0 0.0
        %324 = vmatpush1.msra.mxu0 %v279
        %325 = vmatprep.subr.mxu0 0.0
        %326 = vmatpush1.msra.mxu0 %v278
        %327 = vmatprep.subr.mxu0 0.0
        %328 = vmatpush1.msra.mxu0 %v277
        %329 = vmatprep.subr.mxu0 0.0
        %330 = vmatpush1.msra.mxu0 %v276
        %331 = vmatprep.subr.mxu0 0.0
        %332 = vmatpush2.msra.mxu0 0.0
        %333 = vmatprep.subr.mxu0 0.0
        %334 = vmatpush2.msra.mxu0 0.0
        %335 = vmatprep.subr.mxu0 0.0
        %336 = vmatpush2.msra.mxu0 0.0
        %337 = vmatprep.subr.mxu0 0.0
        %338 = vmatpush2.msra.mxu0 0.0
        %339 = vmatprep.subr.mxu0 0.0
        %340 = vmatpush2.msra.mxu0 0.0
        %341 = vmatprep.subr.mxu0 0.0
        %342 = vmatpush2.msra.mxu0 0.0
        %343 = vmatprep.subr.mxu0 0.0
        %344 = vmatpush2.msra.mxu0 0.0
        %345 = vmatprep.subr.mxu0 0.0
        %346 = vmatpush2.msra.mxu0 0.0
        %347 = vmatprep.subr.mxu0 0.0
        %348 = vmatpush2.msra.mxu0 0.0
        %349 = vmatprep.subr.mxu0 0.0
        %350 = vmatpush2.msra.mxu0 0.0
        %351 = vmatprep.subr.mxu0 0.0
        %352 = vmatpush2.msra.mxu0 0.0
        %353 = vmatprep.subr.mxu0 0.0
        %354 = vmatpush2.msra.mxu0 0.0
        %355 = vmatprep.subr.mxu0 0.0
        %356 = vmatpush2.msra.mxu0 0.0
        %357 = vmatprep.subr.mxu0 0.0
        %358 = vmatpush2.msra.mxu0 0.0
        %359 = vmatprep.subr.mxu0 0.0
        %360 = vmatpush2.msra.mxu0 0.0
        %361 = vmatprep.subr.mxu0 0.0
        %362 = vmatpush2.msra.mxu0 0.0
        %363 = vmatprep.mubr.f32.mxu0 0.0
        %364 = vmatmul.mubr.f32.gmra.mxu0 %v274
        %v365 = vpop.f32.mrf.mxu0
        %v366 = vadd.f32 %v297, %v365
        %v367 = vpop.f32.mrf.mxu0
        %368 = vmatprep.mubr.f32.mxu0 0.0
        %369 = vmatmul.mubr.f32.gmra.mxu0 %v275
        %v370 = vpop.f32.mrf.mxu0
        %v371 = vadd.f32 %v297, %v370
        %v372 = vpop.f32.mrf.mxu0
        %373 = vdwg.mxu0
        %v374 = vmax.f32 %v366, 0.0
        %v375 = vmax.f32 %v371, 0.0
        %v376 = vld [vmem:[#allocation7] sm:$0xff]
        %v377 = vld [vmem:[#allocation7 + $0x8] sm:$0xff]
        %v378 = vld [vmem:[#allocation7 + $0x10] sm:$0xff]
        %v379 = vld [vmem:[#allocation7 + $0x18] sm:$0xff]
        %v380 = vld [vmem:[#allocation7 + $0x20] sm:$0xff]
        %v381 = vld [vmem:[#allocation7 + $0x28] sm:$0xff]
        %v382 = vld [vmem:[#allocation7 + $0x30] sm:$0xff]
        %v383 = vld [vmem:[#allocation7 + $0x38] sm:$0xff]
        %v384 = vld [vmem:[#allocation7 + $0x40] sm:$0xff]
        %v385 = vld [vmem:[#allocation7 + $0x48] sm:$0xff]
        %v386 = vld [vmem:[#allocation7 + $0x50] sm:$0xff]
        %v387 = vld [vmem:[#allocation7 + $0x58] sm:$0xff]
        %v388 = vld [vmem:[#allocation7 + $0x60] sm:$0xff]
        %v389 = vld [vmem:[#allocation7 + $0x68] sm:$0xff]
        %v390 = vld [vmem:[#allocation7 + $0x70] sm:$0xff]
        %v391 = vld [vmem:[#allocation7 + $0x78] sm:$0xff]
        %v392 = vld [vmem:[%s4] sm:$0x1]
        %v394 = vlaneseq
        %v395 = vshrl.u32 %v394, 7
        %v396 = vsub.s32 0, %v395
        %v397 = vrot.slane %v392, %v396
        %399 = vmatprep.subr.mxu0 0.0
        %400 = vmatpush1.msra.mxu0 %v391
        %401 = vmatprep.subr.mxu0 0.0
        %402 = vmatpush1.msra.mxu0 %v390
        %403 = vmatprep.subr.mxu0 0.0
        %404 = vmatpush1.msra.mxu0 %v389
        %405 = vmatprep.subr.mxu0 0.0
        %406 = vmatpush1.msra.mxu0 %v388
        %407 = vmatprep.subr.mxu0 0.0
        %408 = vmatpush1.msra.mxu0 %v387
        %409 = vmatprep.subr.mxu0 0.0
        %410 = vmatpush1.msra.mxu0 %v386
        %411 = vmatprep.subr.mxu0 0.0
        %412 = vmatpush1.msra.mxu0 %v385
        %413 = vmatprep.subr.mxu0 0.0
        %414 = vmatpush1.msra.mxu0 %v384
        %415 = vmatprep.subr.mxu0 0.0
        %416 = vmatpush1.msra.mxu0 %v383
        %417 = vmatprep.subr.mxu0 0.0
        %418 = vmatpush1.msra.mxu0 %v382
        %419 = vmatprep.subr.mxu0 0.0
        %420 = vmatpush1.msra.mxu0 %v381
        %421 = vmatprep.subr.mxu0 0.0
        %422 = vmatpush1.msra.mxu0 %v380
        %423 = vmatprep.subr.mxu0 0.0
        %424 = vmatpush1.msra.mxu0 %v379
        %425 = vmatprep.subr.mxu0 0.0
        %426 = vmatpush1.msra.mxu0 %v378
        %427 = vmatprep.subr.mxu0 0.0
        %428 = vmatpush1.msra.mxu0 %v377
        %429 = vmatprep.subr.mxu0 0.0
        %430 = vmatpush1.msra.mxu0 %v376
        %431 = vmatprep.subr.mxu0 0.0
        %432 = vmatpush2.msra.mxu0 0.0
        %433 = vmatprep.subr.mxu0 0.0
        %434 = vmatpush2.msra.mxu0 0.0
        %435 = vmatprep.subr.mxu0 0.0
        %436 = vmatpush2.msra.mxu0 0.0
        %437 = vmatprep.subr.mxu0 0.0
        %438 = vmatpush2.msra.mxu0 0.0
        %439 = vmatprep.subr.mxu0 0.0
        %440 = vmatpush2.msra.mxu0 0.0
        %441 = vmatprep.subr.mxu0 0.0
        %442 = vmatpush2.msra.mxu0 0.0
        %443 = vmatprep.subr.mxu0 0.0
        %444 = vmatpush2.msra.mxu0 0.0
        %445 = vmatprep.subr.mxu0 0.0
        %446 = vmatpush2.msra.mxu0 0.0
        %447 = vmatprep.subr.mxu0 0.0
        %448 = vmatpush2.msra.mxu0 0.0
        %449 = vmatprep.subr.mxu0 0.0
        %450 = vmatpush2.msra.mxu0 0.0
        %451 = vmatprep.subr.mxu0 0.0
        %452 = vmatpush2.msra.mxu0 0.0
        %453 = vmatprep.subr.mxu0 0.0
        %454 = vmatpush2.msra.mxu0 0.0
        %455 = vmatprep.subr.mxu0 0.0
        %456 = vmatpush2.msra.mxu0 0.0
        %457 = vmatprep.subr.mxu0 0.0
        %458 = vmatpush2.msra.mxu0 0.0
        %459 = vmatprep.subr.mxu0 0.0
        %460 = vmatpush2.msra.mxu0 0.0
        %461 = vmatprep.subr.mxu0 0.0
        %462 = vmatpush2.msra.mxu0 0.0
        %463 = vmatprep.mubr.f32.mxu0 0.0
        %464 = vmatmul.mubr.f32.gmra.mxu0 %v374
        %v465 = vpop.f32.mrf.mxu0
        %v466 = vadd.f32 %v397, %v465
        %v467 = vpop.f32.mrf.mxu0
        %468 = vmatprep.mubr.f32.mxu0 0.0
        %469 = vmatmul.mubr.f32.gmra.mxu0 %v375
        %v470 = vpop.f32.mrf.mxu0
        %v471 = vadd.f32 %v397, %v470
        %v472 = vpop.f32.mrf.mxu0
        %473 = vdwg.mxu0
        %v474 = vadd.f32 %v466, %v274
        %v475 = vadd.f32 %v471, %v275
        %v476 = vmax.f32 %v474, 0.0
        %v477 = vmax.f32 %v475, 0.0
        %478 = vst [vmem:[%s271] sm:$0xff] %v476
        %479 = vst [vmem:[%s271 + $0x8] sm:$0xff] %v477
        %s480 = sand.u32 %s141, 1
        %s481 = scalar_lea.sflag [#allocation4], %s480
        %s482 = sand.u32 %s141, 1
        %s483 = smul.addr %s482, 16
        %s484 = scalar_lea.vmem [#allocation8], %s483
        // Predicated region
        $region53: #{tpu_custom_call.1} parent=39 // pred_check
          %p485 = pneg %p151
        $region54: #{tpu_custom_call.1} parent=39 // pred_check_branch
          %487 = sbr.rel (%p485) target = $region56
        $region55: #{tpu_custom_call.1} parent=39 // pred_region
          %s488 = smul.u32 2, %s23
          %s490 = ssub.s32 256, 256
          %491 = vsyncadd %s481, %s490
          %s492 = smul.addr %s488, 128
          %s493 = scalar_lea.hbm %s5, %s492
          %s494 = sshll.u32 %s484, 4
          %s495 = int_to_ptr.vmem [resolvable:$true] %s494
          %500 = dma.vmem_to_hbm [thread:$0]  %s495, 256, %s493, %s481, 128, 128, 8
        $region56: #{tpu_custom_call.1} parent=39 // pred_fallthru
          _
      $region40: #{tpu_custom_call.1} parent=5 // pred_fallthru
        _
      %p501 = scmp.le.s32.totalorder 2, %s18
      // Predicated region
      $region57: #{tpu_custom_call.1} parent=5 // pred_check
        %p502 = pneg %p501
      $region58: #{tpu_custom_call.1} parent=5 // pred_check_branch
        %504 = sbr.rel (%p502) target = $region60
      $region59: #{tpu_custom_call.1} parent=5 // pred_region
        %s505 = ssub.s32 %s18, 2
        // Predicated region
        $region61: #{tpu_custom_call.1} parent=59 // pred_check
          %p506 = pneg %p157
        $region62: #{tpu_custom_call.1} parent=59 // pred_check_branch
          %508 = sbr.rel (%p506) target = $region64
        $region63: #{tpu_custom_call.1} parent=59 // pred_region
          %s509 = sand.u32 %s142, 1
          %s510 = scalar_lea.sflag [#allocation4], %s509
          %s511 = sand.u32 %s142, 1
          %s512 = smul.addr %s511, 16
          %s513 = scalar_lea.vmem [#allocation8], %s512
          %514 = dma.done %s510, 256
        $region64: #{tpu_custom_call.1} parent=59 // pred_fallthru
          _
      $region60: #{tpu_custom_call.1} parent=5 // pred_fallthru
        _
    $region6: #{tpu_custom_call.1} parent=1 // loop_footer
      %s22 = sadd.s32 1, %s18
    $region7: #{tpu_custom_call.1} parent=1 // loop_footer_branch
      %17 = sbr.rel target = $region3
    $region8: #{tpu_custom_call.1} parent=1 // loop_exit
      _
    %515 = vsyncpa [#allocation3], 1
    %s516 = scalar_lea.sflag [#allocation3], 1
    %517 = vsyncpa %s516, 1
    %518 = vsyncpa [#allocation6], 1
    %519 = vsyncpa [#allocation4], 1
    %s520 = scalar_lea.sflag [#allocation4], 1
    %521 = vsyncpa %s520, 1

// kernel: tpu_custom_call.1
$region0: #{tpu_custom_call.1}
  #allocation0 [shape = 'u32[]', space=smem, size = 0x4, offset = 0x4, fixed_abs, tag = 'smem constant byte address 0x4 - core index']
  #allocation1 [shape = 'u32[144,128]{1,0:T(1,128)}', space=vmem, size = 0x12000, scoped, tag = 'internal scratch']
  %s0 = inlined_call_operand.hbm [shape: f32[128,128], index: 0, kind: input, shape index: {}]
  %s1 = inlined_call_operand.hbm [shape: f32[128,128], index: 1, kind: input, shape index: {}]
  %s2 = inlined_call_operand.vmem [shape: f32[1,128], index: 2, kind: input, shape index: {}]
  %s3 = inlined_call_operand.hbm [shape: f32[128,128], index: 3, kind: input, shape index: {}]
  %s4 = inlined_call_operand.vmem [shape: f32[1,128], index: 4, kind: input, shape index: {}]
  %s5 = inlined_call_operand.hbm [shape: f32[128,128], index: 5, kind: output, shape index: {}]
  %s6 = sld [smem:[#allocation0]]
  $region65: #{tpu_custom_call.1} parent=0
    _
  %s8 = ssub.s32 1, %s6
  %s9 = scalar_select 0, %s8, %s6
  $region1: #{tpu_custom_call.1} parent=0
    #allocation2 [shape = 'u8[16384]{0}', space=vmem, size = 0x4000, scoped, tag = 'input window, operand 0']
    #allocation3 [shape = 's32[2]{0}', space=sflag, size = 0x8, scoped, tag = 'scoped memory for tpu_custom_call.1']
    #allocation4 [shape = 's32[2]{0}', space=sflag, size = 0x8, scoped, tag = 'scoped memory for tpu_custom_call.1']
    #allocation5 [shape = 'u8[65536]{0}', space=vmem, size = 0x10000, scoped, tag = 'input window, operand 1, single buffered']
    #allocation6 [shape = 's32[1]{0}', space=sflag, size = 0x4, scoped, tag = 'scoped memory for tpu_custom_call.1']
    #allocation7 [shape = 'u8[65536]{0}', space=vmem, size = 0x10000, scoped, tag = 'input window, operand 3, single buffered']
    #allocation8 [shape = 'u8[16384]{0}', space=vmem, size = 0x4000, scoped, tag = 'output window, operand 0']
    %10 = vsyncpa [#allocation3], 0
    %s11 = scalar_lea.sflag [#allocation3], 1
    %12 = vsyncpa %s11, 0
    %13 = vsyncpa [#allocation6], 0
    %14 = vsyncpa [#allocation4], 0
    %s15 = scalar_lea.sflag [#allocation4], 1
    %16 = vsyncpa %s15, 0
    loop: start=0, step=1, limit=10
    $region2: #{tpu_custom_call.1} parent=1 // loop_pre_header
      _
    $region3: #{tpu_custom_call.1} parent=1 // loop_header
      %s18 = sphi 0, %s22
      %p19 = scmp.ge.s32.totalorder %s18, 10
      %s28 = sphi 0, %s30
      %s31 = sphi 0, %s28
      %s32 = sphi 0, %s31
      %s48 = sphi 0, %s32
      %s52 = sphi 0, %s52
      %s54 = sphi 0, %s52
      %s55 = sphi 0, %s54
      %s69 = sphi 0, %s55
      %s73 = sphi 0, %s73
      %s75 = sphi 0, %s73
      %s76 = sphi 0, %s75
      %s90 = sphi 0, %s76
      %s94 = sphi 0, %s94
      %s96 = sphi 0, %s94
      %s97 = sphi 0, %s96
      %s111 = sphi 0, %s97
      %s115 = sphi 0, %s115
      %s117 = sphi 0, %s115
      %s118 = sphi 0, %s117
      %s132 = sphi 0, %s118
      %s138 = sphi 0, %s140
      %s141 = sphi 0, %s138
      %s142 = sphi 0, %s141
      %s158 = sphi 0, %s142
    $region4: #{tpu_custom_call.1} parent=1 // loop_header_branch
      %21 = sbr.rel (%p19) target = $region8
    $region5: #{tpu_custom_call.1} parent=1 // loop_body
      %s23 = ssub.s32 %s18, 1
      %s24 = ssub.s32 %s18, 2
      %s25 = sadd.s32 %s18, 1
      %s26 = ssub.s32 %s18, %s25
      %p27 = scmp.eq.s32.totalorder %s26, 0
      %s29 = sadd.s32 %s28, 1
      %s30 = scalar_select %p27, %s28, %s29
      %p33 = pneg %p27
      %p34 = scmp.eq.s32.totalorder %s18, 7
      %p35 = por %p33, %p34
      %p36 = scmp.ne.s32.totalorder %s28, %s31
      %p37 = scmp.eq.s32.totalorder %s18, 0
      %p38 = por %p36, %p37
      %p39 = scmp.ne.s32.totalorder %s28, %s31
      %p40 = scmp.eq.s32.totalorder %s23, 7
      %p41 = por %p39, %p40
      %p42 = scmp.ne.s32.totalorder %s31, %s32
      %p43 = scmp.eq.s32.totalorder %s23, 0
      %p44 = por %p42, %p43
      %p45 = scmp.ne.s32.totalorder %s31, %s32
      %p46 = scmp.eq.s32.totalorder %s24, 7
      %p47 = por %p45, %p46
      %p49 = scmp.ne.s32.totalorder %s32, %s48
      %p50 = scmp.eq.s32.totalorder %s24, 0
      %p51 = por %p49, %p50
      %s53 = sadd.s32 %s52, 1
      %p56 = scmp.eq.s32.totalorder %s18, 7
      %p57 = scmp.ne.s32.totalorder %s52, %s54
      %p58 = scmp.eq.s32.totalorder %s18, 0
      %p59 = por %p57, %p58
      %p60 = scmp.ne.s32.totalorder %s52, %s54
      %p61 = scmp.eq.s32.totalorder %s23, 7
      %p62 = por %p60, %p61
      %p63 = scmp.ne.s32.totalorder %s54, %s55
      %p64 = scmp.eq.s32.totalorder %s23, 0
      %p65 = por %p63, %p64
      %p66 = scmp.ne.s32.totalorder %s54, %s55
      %p67 = scmp.eq.s32.totalorder %s24, 7
      %p68 = por %p66, %p67
      %p70 = scmp.ne.s32.totalorder %s55, %s69
      %p71 = scmp.eq.s32.totalorder %s24, 0
      %p72 = por %p70, %p71
      %s74 = sadd.s32 %s73, 1
      %p77 = scmp.eq.s32.totalorder %s18, 7
      %p78 = scmp.ne.s32.totalorder %s73, %s75
      %p79 = scmp.eq.s32.totalorder %s18, 0
      %p80 = por %p78, %p79
      %p81 = scmp.ne.s32.totalorder %s73, %s75
      %p82 = scmp.eq.s32.totalorder %s23, 7
      %p83 = por %p81, %p82
      %p84 = scmp.ne.s32.totalorder %s75, %s76
      %p85 = scmp.eq.s32.totalorder %s23, 0
      %p86 = por %p84, %p85
      %p87 = scmp.ne.s32.totalorder %s75, %s76
      %p88 = scmp.eq.s32.totalorder %s24, 7
      %p89 = por %p87, %p88
      %p91 = scmp.ne.s32.totalorder %s76, %s90
      %p92 = scmp.eq.s32.totalorder %s24, 0
      %p93 = por %p91, %p92
      %s95 = sadd.s32 %s94, 1
      %p98 = scmp.eq.s32.totalorder %s18, 7
      %p99 = scmp.ne.s32.totalorder %s94, %s96
      %p100 = scmp.eq.s32.totalorder %s18, 0
      %p101 = por %p99, %p100
      %p102 = scmp.ne.s32.totalorder %s94, %s96
      %p103 = scmp.eq.s32.totalorder %s23, 7
      %p104 = por %p102, %p103
      %p105 = scmp.ne.s32.totalorder %s96, %s97
      %p106 = scmp.eq.s32.totalorder %s23, 0
      %p107 = por %p105, %p106
      %p108 = scmp.ne.s32.totalorder %s96, %s97
      %p109 = scmp.eq.s32.totalorder %s24, 7
      %p110 = por %p108, %p109
      %p112 = scmp.ne.s32.totalorder %s97, %s111
      %p113 = scmp.eq.s32.totalorder %s24, 0
      %p114 = por %p112, %p113
      %s116 = sadd.s32 %s115, 1
      %p119 = scmp.eq.s32.totalorder %s18, 7
      %p120 = scmp.ne.s32.totalorder %s115, %s117
      %p121 = scmp.eq.s32.totalorder %s18, 0
      %p122 = por %p120, %p121
      %p123 = scmp.ne.s32.totalorder %s115, %s117
      %p124 = scmp.eq.s32.totalorder %s23, 7
      %p125 = por %p123, %p124
      %p126 = scmp.ne.s32.totalorder %s117, %s118
      %p127 = scmp.eq.s32.totalorder %s23, 0
      %p128 = por %p126, %p127
      %p129 = scmp.ne.s32.totalorder %s117, %s118
      %p130 = scmp.eq.s32.totalorder %s24, 7
      %p131 = por %p129, %p130
      %p133 = scmp.ne.s32.totalorder %s118, %s132
      %p134 = scmp.eq.s32.totalorder %s24, 0
      %p135 = por %p133, %p134
      %s136 = ssub.s32 %s18, %s25
      %p137 = scmp.eq.s32.totalorder %s136, 0
      %s139 = sadd.s32 %s138, 1
      %s140 = scalar_select %p137, %s138, %s139
      %p143 = pneg %p137
      %p144 = scmp.eq.s32.totalorder %s18, 7
      %p145 = por %p143, %p144
      %p146 = scmp.ne.s32.totalorder %s138, %s141
      %p147 = scmp.eq.s32.totalorder %s18, 0
      %p148 = por %p146, %p147
      %p149 = scmp.ne.s32.totalorder %s138, %s141
      %p150 = scmp.eq.s32.totalorder %s23, 7
      %p151 = por %p149, %p150
      %p152 = scmp.ne.s32.totalorder %s141, %s142
      %p153 = scmp.eq.s32.totalorder %s23, 0
      %p154 = por %p152, %p153
      %p155 = scmp.ne.s32.totalorder %s141, %s142
      %p156 = scmp.eq.s32.totalorder %s24, 7
      %p157 = por %p155, %p156
      %p159 = scmp.ne.s32.totalorder %s142, %s158
      %p160 = scmp.eq.s32.totalorder %s24, 0
      %p161 = por %p159, %p160
      %p162 = scmp.le.s32.totalorder 1, %s18
      %p163 = scmp.lt.s32.totalorder %s18, 9
      %p164 = pnand %p162, %p163
      %p165 = pneg %p164
      // Predicated region
      $region9: #{tpu_custom_call.1} parent=5 // pred_check
        _
      $region10: #{tpu_custom_call.1} parent=5 // pred_check_branch
        %167 = sbr.rel (%p164) target = $region12
      $region11: #{tpu_custom_call.1} parent=5 // pred_region
        %s168 = ssub.s32 %s18, 1
        // Predicated region
        $region13: #{tpu_custom_call.1} parent=11 // pred_check
          %p169 = pneg %p65
        $region14: #{tpu_custom_call.1} parent=11 // pred_check_branch
          %171 = sbr.rel (%p169) target = $region16
        $region15: #{tpu_custom_call.1} parent=11 // pred_region
          %s173 = ssub.s32 2048, 2048
          %174 = vsyncadd [#allocation6], %s173
          %s175 = sshll.u32 [#allocation5], 4
          %s176 = int_to_ptr.vmem [resolvable:$true] %s175
          %181 = dma.hbm_to_vmem [thread:$0]  %s1, 2048, %s176, [#allocation6], 128, 128, 8
        $region16: #{tpu_custom_call.1} parent=11 // pred_fallthru
          _
        // Predicated region
        $region17: #{tpu_custom_call.1} parent=11 // pred_check
          %p182 = pneg %p86
        $region18: #{tpu_custom_call.1} parent=11 // pred_check_branch
          %184 = sbr.rel (%p182) target = $region20
        $region19: #{tpu_custom_call.1} parent=11 // pred_region
          _
        $region20: #{tpu_custom_call.1} parent=11 // pred_fallthru
          _
        // Predicated region
        $region21: #{tpu_custom_call.1} parent=11 // pred_check
          %p185 = pneg %p107
        $region22: #{tpu_custom_call.1} parent=11 // pred_check_branch
          %187 = sbr.rel (%p185) target = $region24
        $region23: #{tpu_custom_call.1} parent=11 // pred_region
          %s189 = ssub.s32 2048, 2048
          %190 = vsyncadd [#allocation6], %s189
          %s191 = sshll.u32 [#allocation7], 4
          %s192 = int_to_ptr.vmem [resolvable:$true] %s191
          %197 = dma.hbm_to_vmem [thread:$0]  %s3, 2048, %s192, [#allocation6], 128, 128, 8
        $region24: #{tpu_custom_call.1} parent=11 // pred_fallthru
          _
        // Predicated region
        $region25: #{tpu_custom_call.1} parent=11 // pred_check
          %p198 = pneg %p128
        $region26: #{tpu_custom_call.1} parent=11 // pred_check_branch
          %200 = sbr.rel (%p198) target = $region28
        $region27: #{tpu_custom_call.1} parent=11 // pred_region
          _
        $region28: #{tpu_custom_call.1} parent=11 // pred_fallthru
          _
      $region12: #{tpu_custom_call.1} parent=5 // pred_fallthru
        _
      %p201 = scmp.lt.s32.totalorder %s18, 8
      // Predicated region
      $region29: #{tpu_custom_call.1} parent=5 // pred_check
        %p202 = pneg %p201
      $region30: #{tpu_custom_call.1} parent=5 // pred_check_branch
        %204 = sbr.rel (%p202) target = $region32
      $region31: #{tpu_custom_call.1} parent=5 // pred_region
        // Predicated region
        $region33: #{tpu_custom_call.1} parent=31 // pred_check
          %p205 = pneg %p38
        $region34: #{tpu_custom_call.1} parent=31 // pred_check_branch
          %207 = sbr.rel (%p205) target = $region36
        $region35: #{tpu_custom_call.1} parent=31 // pred_region
          %s208 = sand.u32 %s28, 1
          %s209 = scalar_lea.sflag [#allocation3], %s208
          %s210 = sand.u32 %s28, 1
          %s211 = smul.addr %s210, 16
          %s212 = scalar_lea.vmem [#allocation2], %s211
          %s213 = smul.u32 2, %s18
          %s215 = ssub.s32 256, 256
          %216 = vsyncadd %s209, %s215
          %s217 = smul.addr %s213, 128
          %s218 = scalar_lea.hbm %s0, %s217
          %s219 = sshll.u32 %s212, 4
          %s220 = int_to_ptr.vmem [resolvable:$true] %s219
          %225 = dma.hbm_to_vmem [thread:$0]  %s218, 256, %s220, %s209, 128, 128, 8
        $region36: #{tpu_custom_call.1} parent=31 // pred_fallthru
          _
      $region32: #{tpu_custom_call.1} parent=5 // pred_fallthru
        _
      %p226 = scmp.le.s32.totalorder 1, %s18
      %p227 = scmp.lt.s32.totalorder %s18, 9
      %p228 = pnand %p226, %p227
      %p229 = pneg %p228
      // Predicated region
      $region37: #{tpu_custom_call.1} parent=5 // pred_check
        _
      $region38: #{tpu_custom_call.1} parent=5 // pred_check_branch
        %231 = sbr.rel (%p228) target = $region40
      $region39: #{tpu_custom_call.1} parent=5 // pred_region
        %s232 = ssub.s32 %s18, 1
        %s233 = sand.u32 %s31, 1
        %s234 = scalar_lea.sflag [#allocation3], %s233
        %s235 = sand.u32 %s31, 1
        %s236 = smul.addr %s235, 16
        %s237 = scalar_lea.vmem [#allocation2], %s236
        // Predicated region
        $region41: #{tpu_custom_call.1} parent=39 // pred_check
          %p238 = pneg %p44
        $region42: #{tpu_custom_call.1} parent=39 // pred_check_branch
          %240 = sbr.rel (%p238) target = $region44
        $region43: #{tpu_custom_call.1} parent=39 // pred_region
          %241 = dma.done %s234, 256
        $region44: #{tpu_custom_call.1} parent=39 // pred_fallthru
          _
        // Predicated region
        $region45: #{tpu_custom_call.1} parent=39 // pred_check
          %p242 = pneg %p65
        $region46: #{tpu_custom_call.1} parent=39 // pred_check_branch
          %244 = sbr.rel (%p242) target = $region48
        $region47: #{tpu_custom_call.1} parent=39 // pred_region
          %245 = dma.done [#allocation6], 2048
        $region48: #{tpu_custom_call.1} parent=39 // pred_fallthru
          _
        // Predicated region
        $region49: #{tpu_custom_call.1} parent=39 // pred_check
          %p246 = pneg %p107
        $region50: #{tpu_custom_call.1} parent=39 // pred_check_branch
          %248 = sbr.rel (%p246) target = $region52
        $region51: #{tpu_custom_call.1} parent=39 // pred_region
          %249 = dma.done [#allocation6], 2048
        $region52: #{tpu_custom_call.1} parent=39 // pred_fallthru
          _
        %s250 = sand.u32 %s31, 1
        %s251 = scalar_lea.sflag [#allocation3], %s250
        %s252 = sand.u32 %s31, 1
        %s253 = smul.addr %s252, 16
        %s254 = scalar_lea.vmem [#allocation2], %s253
        %p255 = pneg %p44
        %p256 = pneg %p41
        %p257 = pneg %p65
        %p258 = pneg %p62
        %p259 = pneg %p86
        %p260 = pneg %p83
        %p261 = pneg %p107
        %p262 = pneg %p104
        %p263 = pneg %p128
        %p264 = pneg %p125
        %p265 = pneg %p154
        %p266 = pneg %p151
        %s267 = sand.u32 %s141, 1
        %s268 = scalar_lea.sflag [#allocation4], %s267
        %s269 = sand.u32 %s141, 1
        %s270 = smul.addr %s269, 16
        %s271 = scalar_lea.vmem [#allocation8], %s270
        %s272 = smul.u32 2, %s23
        %s273 = smul.u32 2, %s23
        %v274 = vld [vmem:[%s237] sm:$0xff]
        %v275 = vld [vmem:[%s237 + $0x8] sm:$0xff]
        %v276 = vld [vmem:[#allocation5] sm:$0xff]
        %v277 = vld [vmem:[#allocation5 + $0x8] sm:$0xff]
        %v278 = vld [vmem:[#allocation5 + $0x10] sm:$0xff]
        %v279 = vld [vmem:[#allocation5 + $0x18] sm:$0xff]
        %v280 = vld [vmem:[#allocation5 + $0x20] sm:$0xff]
        %v281 = vld [vmem:[#allocation5 + $0x28] sm:$0xff]
        %v282 = vld [vmem:[#allocation5 + $0x30] sm:$0xff]
        %v283 = vld [vmem:[#allocation5 + $0x38] sm:$0xff]
        %v284 = vld [vmem:[#allocation5 + $0x40] sm:$0xff]
        %v285 = vld [vmem:[#allocation5 + $0x48] sm:$0xff]
        %v286 = vld [vmem:[#allocation5 + $0x50] sm:$0xff]
        %v287 = vld [vmem:[#allocation5 + $0x58] sm:$0xff]
        %v288 = vld [vmem:[#allocation5 + $0x60] sm:$0xff]
        %v289 = vld [vmem:[#allocation5 + $0x68] sm:$0xff]
        %v290 = vld [vmem:[#allocation5 + $0x70] sm:$0xff]
        %v291 = vld [vmem:[#allocation5 + $0x78] sm:$0xff]
        %v292 = vld [vmem:[%s2] sm:$0x1]
        %v294 = vlaneseq
        %v295 = vshrl.u32 %v294, 7
        %v296 = vsub.s32 0, %v295
        %v297 = vrot.slane %v292, %v296
        %299 = vmatprep.subr.mxu0 0.0
        %300 = vmatpush1.msra.mxu0 %v291
        %301 = vmatprep.subr.mxu0 0.0
        %302 = vmatpush1.msra.mxu0 %v290
        %303 = vmatprep.subr.mxu0 0.0
        %304 = vmatpush1.msra.mxu0 %v289
        %305 = vmatprep.subr.mxu0 0.0
        %306 = vmatpush1.msra.mxu0 %v288
        %307 = vmatprep.subr.mxu0 0.0
        %308 = vmatpush1.msra.mxu0 %v287
        %309 = vmatprep.subr.mxu0 0.0
        %310 = vmatpush1.msra.mxu0 %v286
        %311 = vmatprep.subr.mxu0 0.0
        %312 = vmatpush1.msra.mxu0 %v285
        %313 = vmatprep.subr.mxu0 0.0
        %314 = vmatpush1.msra.mxu0 %v284
        %315 = vmatprep.subr.mxu0 0.0
        %316 = vmatpush1.msra.mxu0 %v283
        %317 = vmatprep.subr.mxu0 0.0
        %318 = vmatpush1.msra.mxu0 %v282
        %319 = vmatprep.subr.mxu0 0.0
        %320 = vmatpush1.msra.mxu0 %v281
        %321 = vmatprep.subr.mxu0 0.0
        %322 = vmatpush1.msra.mxu0 %v280
        %323 = vmatprep.subr.mxu0 0.0
        %324 = vmatpush1.msra.mxu0 %v279
        %325 = vmatprep.subr.mxu0 0.0
        %326 = vmatpush1.msra.mxu0 %v278
        %327 = vmatprep.subr.mxu0 0.0
        %328 = vmatpush1.msra.mxu0 %v277
        %329 = vmatprep.subr.mxu0 0.0
        %330 = vmatpush1.msra.mxu0 %v276
        %331 = vmatprep.subr.mxu0 0.0
        %332 = vmatpush2.msra.mxu0 0.0
        %333 = vmatprep.subr.mxu0 0.0
        %334 = vmatpush2.msra.mxu0 0.0
        %335 = vmatprep.subr.mxu0 0.0
        %336 = vmatpush2.msra.mxu0 0.0
        %337 = vmatprep.subr.mxu0 0.0
        %338 = vmatpush2.msra.mxu0 0.0
        %339 = vmatprep.subr.mxu0 0.0
        %340 = vmatpush2.msra.mxu0 0.0
        %341 = vmatprep.subr.mxu0 0.0
        %342 = vmatpush2.msra.mxu0 0.0
        %343 = vmatprep.subr.mxu0 0.0
        %344 = vmatpush2.msra.mxu0 0.0
        %345 = vmatprep.subr.mxu0 0.0
        %346 = vmatpush2.msra.mxu0 0.0
        %347 = vmatprep.subr.mxu0 0.0
        %348 = vmatpush2.msra.mxu0 0.0
        %349 = vmatprep.subr.mxu0 0.0
        %350 = vmatpush2.msra.mxu0 0.0
        %351 = vmatprep.subr.mxu0 0.0
        %352 = vmatpush2.msra.mxu0 0.0
        %353 = vmatprep.subr.mxu0 0.0
        %354 = vmatpush2.msra.mxu0 0.0
        %355 = vmatprep.subr.mxu0 0.0
        %356 = vmatpush2.msra.mxu0 0.0
        %357 = vmatprep.subr.mxu0 0.0
        %358 = vmatpush2.msra.mxu0 0.0
        %359 = vmatprep.subr.mxu0 0.0
        %360 = vmatpush2.msra.mxu0 0.0
        %361 = vmatprep.subr.mxu0 0.0
        %362 = vmatpush2.msra.mxu0 0.0
        %363 = vmatprep.mubr.f32.mxu0 0.0
        %364 = vmatmul.mubr.f32.gmra.mxu0 %v274
        %v365 = vpop.f32.mrf.mxu0
        %v366 = vadd.f32 %v297, %v365
        %v367 = vpop.f32.mrf.mxu0
        %368 = vmatprep.mubr.f32.mxu0 0.0
        %369 = vmatmul.mubr.f32.gmra.mxu0 %v275
        %v370 = vpop.f32.mrf.mxu0
        %v371 = vadd.f32 %v297, %v370
        %v372 = vpop.f32.mrf.mxu0
        %373 = vdwg.mxu0
        %v374 = vmax.f32 %v366, 0.0
        %v375 = vmax.f32 %v371, 0.0
        %v376 = vld [vmem:[#allocation7] sm:$0xff]
        %v377 = vld [vmem:[#allocation7 + $0x8] sm:$0xff]
        %v378 = vld [vmem:[#allocation7 + $0x10] sm:$0xff]
        %v379 = vld [vmem:[#allocation7 + $0x18] sm:$0xff]
        %v380 = vld [vmem:[#allocation7 + $0x20] sm:$0xff]
        %v381 = vld [vmem:[#allocation7 + $0x28] sm:$0xff]
        %v382 = vld [vmem:[#allocation7 + $0x30] sm:$0xff]
        %v383 = vld [vmem:[#allocation7 + $0x38] sm:$0xff]
        %v384 = vld [vmem:[#allocation7 + $0x40] sm:$0xff]
        %v385 = vld [vmem:[#allocation7 + $0x48] sm:$0xff]
        %v386 = vld [vmem:[#allocation7 + $0x50] sm:$0xff]
        %v387 = vld [vmem:[#allocation7 + $0x58] sm:$0xff]
        %v388 = vld [vmem:[#allocation7 + $0x60] sm:$0xff]
        %v389 = vld [vmem:[#allocation7 + $0x68] sm:$0xff]
        %v390 = vld [vmem:[#allocation7 + $0x70] sm:$0xff]
        %v391 = vld [vmem:[#allocation7 + $0x78] sm:$0xff]
        %v392 = vld [vmem:[%s4] sm:$0x1]
        %v394 = vlaneseq
        %v395 = vshrl.u32 %v394, 7
        %v396 = vsub.s32 0, %v395
        %v397 = vrot.slane %v392, %v396
        %399 = vmatprep.subr.mxu0 0.0
        %400 = vmatpush1.msra.mxu0 %v391
        %401 = vmatprep.subr.mxu0 0.0
        %402 = vmatpush1.msra.mxu0 %v390
        %403 = vmatprep.subr.mxu0 0.0
        %404 = vmatpush1.msra.mxu0 %v389
        %405 = vmatprep.subr.mxu0 0.0
        %406 = vmatpush1.msra.mxu0 %v388
        %407 = vmatprep.subr.mxu0 0.0
        %408 = vmatpush1.msra.mxu0 %v387
        %409 = vmatprep.subr.mxu0 0.0
        %410 = vmatpush1.msra.mxu0 %v386
        %411 = vmatprep.subr.mxu0 0.0
        %412 = vmatpush1.msra.mxu0 %v385
        %413 = vmatprep.subr.mxu0 0.0
        %414 = vmatpush1.msra.mxu0 %v384
        %415 = vmatprep.subr.mxu0 0.0
        %416 = vmatpush1.msra.mxu0 %v383
        %417 = vmatprep.subr.mxu0 0.0
        %418 = vmatpush1.msra.mxu0 %v382
        %419 = vmatprep.subr.mxu0 0.0
        %420 = vmatpush1.msra.mxu0 %v381
        %421 = vmatprep.subr.mxu0 0.0
        %422 = vmatpush1.msra.mxu0 %v380
        %423 = vmatprep.subr.mxu0 0.0
        %424 = vmatpush1.msra.mxu0 %v379
        %425 = vmatprep.subr.mxu0 0.0
        %426 = vmatpush1.msra.mxu0 %v378
        %427 = vmatprep.subr.mxu0 0.0
        %428 = vmatpush1.msra.mxu0 %v377
        %429 = vmatprep.subr.mxu0 0.0
        %430 = vmatpush1.msra.mxu0 %v376
        %431 = vmatprep.subr.mxu0 0.0
        %432 = vmatpush2.msra.mxu0 0.0
        %433 = vmatprep.subr.mxu0 0.0
        %434 = vmatpush2.msra.mxu0 0.0
        %435 = vmatprep.subr.mxu0 0.0
        %436 = vmatpush2.msra.mxu0 0.0
        %437 = vmatprep.subr.mxu0 0.0
        %438 = vmatpush2.msra.mxu0 0.0
        %439 = vmatprep.subr.mxu0 0.0
        %440 = vmatpush2.msra.mxu0 0.0
        %441 = vmatprep.subr.mxu0 0.0
        %442 = vmatpush2.msra.mxu0 0.0
        %443 = vmatprep.subr.mxu0 0.0
        %444 = vmatpush2.msra.mxu0 0.0
        %445 = vmatprep.subr.mxu0 0.0
        %446 = vmatpush2.msra.mxu0 0.0
        %447 = vmatprep.subr.mxu0 0.0
        %448 = vmatpush2.msra.mxu0 0.0
        %449 = vmatprep.subr.mxu0 0.0
        %450 = vmatpush2.msra.mxu0 0.0
        %451 = vmatprep.subr.mxu0 0.0
        %452 = vmatpush2.msra.mxu0 0.0
        %453 = vmatprep.subr.mxu0 0.0
        %454 = vmatpush2.msra.mxu0 0.0
        %455 = vmatprep.subr.mxu0 0.0
        %456 = vmatpush2.msra.mxu0 0.0
        %457 = vmatprep.subr.mxu0 0.0
        %458 = vmatpush2.msra.mxu0 0.0
        %459 = vmatprep.subr.mxu0 0.0
        %460 = vmatpush2.msra.mxu0 0.0
        %461 = vmatprep.subr.mxu0 0.0
        %462 = vmatpush2.msra.mxu0 0.0
        %463 = vmatprep.mubr.f32.mxu0 0.0
        %464 = vmatmul.mubr.f32.gmra.mxu0 %v374
        %v465 = vpop.f32.mrf.mxu0
        %v466 = vadd.f32 %v397, %v465
        %v467 = vpop.f32.mrf.mxu0
        %468 = vmatprep.mubr.f32.mxu0 0.0
        %469 = vmatmul.mubr.f32.gmra.mxu0 %v375
        %v470 = vpop.f32.mrf.mxu0
        %v471 = vadd.f32 %v397, %v470
        %v472 = vpop.f32.mrf.mxu0
        %473 = vdwg.mxu0
        %v474 = vadd.f32 %v466, %v274
        %v475 = vadd.f32 %v471, %v275
        %v476 = vmax.f32 %v474, 0.0
        %v477 = vmax.f32 %v475, 0.0
        %478 = vst [vmem:[%s271] sm:$0xff] %v476
        %479 = vst [vmem:[%s271 + $0x8] sm:$0xff] %v477
        %s480 = sand.u32 %s141, 1
        %s481 = scalar_lea.sflag [#allocation4], %s480
        %s482 = sand.u32 %s141, 1
        %s483 = smul.addr %s482, 16
        %s484 = scalar_lea.vmem [#allocation8], %s483
        // Predicated region
        $region53: #{tpu_custom_call.1} parent=39 // pred_check
          %p485 = pneg %p151
        $region54: #{tpu_custom_call.1} parent=39 // pred_check_branch
          %487 = sbr.rel (%p485) target = $region56
        $region55: #{tpu_custom_call.1} parent=39 // pred_region
          %s488 = smul.u32 2, %s23
          %s490 = ssub.s32 256, 256
          %491 = vsyncadd %s481, %s490
          %s492 = smul.addr %s488, 128
          %s493 = scalar_lea.hbm %s5, %s492
          %s494 = sshll.u32 %s484, 4
          %s495 = int_to_ptr.vmem [resolvable:$true] %s494
          %500 = dma.vmem_to_hbm [thread:$0]  %s495, 256, %s493, %s481, 128, 128, 8
        $region56: #{tpu_custom_call.1} parent=39 // pred_fallthru
          _
      $region40: #{tpu_custom_call.1} parent=5 // pred_fallthru
        _
      %p501 = scmp.le.s32.totalorder 2, %s18
      // Predicated region
      $region57: #{tpu_custom_call.1} parent=5 // pred_check
        %p502 = pneg %p501
      $region58: #{tpu_custom_call.1} parent=5 // pred_check_branch
        %504 = sbr.rel (%p502) target = $region60
      $region59: #{tpu_custom_call.1} parent=5 // pred_region
        %s505 = ssub.s32 %s18, 2
        // Predicated region
        $region61: #{tpu_custom_call.1} parent=59 // pred_check
          %p506 = pneg %p157
        $region62: #{tpu_custom_call.1} parent=59 // pred_check_branch
          %508 = sbr.rel (%p506) target = $region64
        $region63: #{tpu_custom_call.1} parent=59 // pred_region
          %s509 = sand.u32 %s142, 1
          %s510 = scalar_lea.sflag [#allocation4], %s509
          %s511 = sand.u32 %s142, 1
          %s512 = smul.addr %s511, 16
          %s513 = scalar_lea.vmem [#allocation8], %s512
          %514 = dma.done %s510, 256
        $region64: #{tpu_custom_call.1} parent=59 // pred_fallthru
          _
      $region60: #{tpu_custom_call.1} parent=5 // pred_fallthru
        _
    $region6: #{tpu_custom_call.1} parent=1 // loop_footer
      %s22 = sadd.s32 1, %s18
    $region7: #{tpu_custom_call.1} parent=1 // loop_footer_branch
      %17 = sbr.rel target = $region3
    $region8: #{tpu_custom_call.1} parent=1 // loop_exit
      _
    %515 = vsyncpa [#allocation3], 1
    %s516 = scalar_lea.sflag [#allocation3], 1
    %517 = vsyncpa %s516, 1
    %518 = vsyncpa [#allocation6], 1
    %519 = vsyncpa [#allocation4], 1
    %s520 = scalar_lea.sflag [#allocation4], 1
    %521 = vsyncpa %s520, 1

</llo_original>
